<compile_context>
chip_gen: v6e
topology: v6e:2x2x1
jax: 0.10.0
libtpu: 0.0.40
codegen_flags: <defaults>
</compile_context>

<pallas_src>
import functools
import numpy as np
import jax
import jax.numpy as jnp
from jax.experimental import pallas as pl
from jax.experimental.pallas import tpu as pltpu

LANE = 128


def _round_up(x, m):
    return ((x + m - 1) // m) * m


def _choose_batch_tile(B, block_b):
    """Pick the batch tile size.

    - B < 16          : one full-extent block (no grid overhead; (8,128) rule is
                        satisfied because the block equals the full array dims).
    - 16 <= B <= block_b: at least 2 tiles (rounded to a multiple of 8) so the
                        "parallel" axis spans both TensorCores on v7x.
    - B > block_b     : fixed block_b-row tiles (edge/overhang tile is clamped
                        by Pallas).
    """
    if B < 16:
        return B
    if B <= block_b:
        return min(block_b, _round_up((B + 1) // 2, 8))
    return block_b


# ----------------------------------------------------------------------------
# n_wires == 10 path: overlapping windows -> pooling-as-matmul against P.
# ----------------------------------------------------------------------------
def build_avg_pool_matrix(H, W, k, stride, pad, dtype=jnp.float32):
    """Pooling matrix matching F.avg_pool2d(count_include_pad=True): divisor is
    always k*k, padded positions contribute zero.  Output axis zero-padded to a
    multiple of 128 so the kernel's stores are lane-dense (unmasked)."""
    out_h = (H + 2 * pad - k) // stride + 1
    out_w = (W + 2 * pad - k) // stride + 1
    f_in = H * W
    f_out = out_h * out_w
    f_out_pad = _round_up(f_out, LANE)
    P = np.zeros((f_in, f_out_pad), dtype=np.float32)
    inv = 1.0 / float(k * k)
    for oi in range(out_h):
        for oj in range(out_w):
            o = oi * out_w + oj
            for di in range(k):
                ii = oi * stride - pad + di
                if 0 <= ii < H:
                    for dj in range(k):
                        jj = oj * stride - pad + dj
                        if 0 <= jj < W:
                            P[ii * W + jj, o] = inv
    return jnp.asarray(P, dtype=dtype), f_out


def _matmul_pool_kernel(x_ref, p_ref, o_ref):
    # One MXU matmul with f32 accumulation; no elementwise work to fuse
    # (ImgFilter.forward has no ReLU/bias/conv on the data path).
    acc = jnp.dot(x_ref[...], p_ref[...], preferred_element_type=jnp.float32)
    o_ref[...] = acc.astype(o_ref.dtype)


def _img_filter_matmul_forward(x, pool_mat, n_out, block_b=1024, trim=True):
    """x: [B, 1, H, W] -> [B, 1, n_out] (or [B, 1, 128] if trim=False)."""
    B = x.shape[0]
    f_in = x.shape[-2] * x.shape[-1]
    c_pad = pool_mat.shape[1]
    assert f_in == pool_mat.shape[0], (f_in, pool_mat.shape)
    x2d = x.reshape(B, f_in)                    # contiguous reshape, no copy

    tb = _choose_batch_tile(B, block_b)
    grid = (pl.cdiv(B, tb),)

    itemsize = jnp.dtype(x.dtype).itemsize
    cost = pl.CostEstimate(
        flops=2 * B * f_in * c_pad,
        transcendentals=0,
        bytes_accessed=(B * f_in + f_in * c_pad + B * c_pad) * itemsize,
    )

    out = pl.pallas_call(
        _matmul_pool_kernel,
        out_shape=jax.ShapeDtypeStruct((B, c_pad), x.dtype),
        grid_spec=pltpu.PrefetchScalarGridSpec(
            num_scalar_prefetch=0,
            grid=grid,
            in_specs=[
                pl.BlockSpec((tb, f_in), lambda i: (i, 0)),       # batch tile of x
                # P is grid-invariant -> single buffer (saves a full extra copy
                # of P in VMEM; double buffering a constant operand is waste).
                pl.BlockSpec((f_in, c_pad), lambda i: (0, 0),
                             pipeline_mode=pl.Buffered(1)),
            ],
            out_specs=pl.BlockSpec((tb, c_pad), lambda i: (i, 0)),
        ),
        compiler_params=pltpu.CompilerParams(
            dimension_semantics=("parallel",)),   # batch axis shards across TCs
        cost_estimate=cost,
    )(x2d, pool_mat)

    if not trim:
        return out.reshape(B, 1, c_pad)           # consumer ignores cols >= n_out
    return out[:, :n_out].reshape(B, 1, n_out)


# ----------------------------------------------------------------------------
# n_wires == 4 path: non-overlapping 6x6 windows -> matrix-free kernel.
# ----------------------------------------------------------------------------
def _pool4_kernel(x_ref, o_ref, *, H, W, k):
    """Non-overlapping k x k average pool with no pooling matrix in HBM.

    Row-group sums via static lane slices of the flattened image (VPU adds),
    then column-group sums + output-lane placement via a tiny matmul against an
    iota-generated constant (zero HBM traffic for the filter).  Output is
    lane-dense (padded to 128 columns)."""
    oh, ow = H // k, W // k
    inv = 1.0 / float(k * k)
    w_iota = jax.lax.broadcasted_iota(jnp.int32, (W, LANE), 0)
    l_iota = jax.lax.broadcasted_iota(jnp.int32, (W, LANE), 1)

    x = x_ref[...]                               # (tb, H*W)
    tb = x.shape[0]
    out = jnp.zeros((tb, LANE), jnp.float32)
    for oi in range(oh):                         # static unroll: oh*k row adds
        r0 = (oi * k) * W
        rs = x[:, r0:r0 + W].astype(jnp.float32)
        for di in range(1, k):
            r0 = (oi * k + di) * W
            rs = rs + x[:, r0:r0 + W].astype(jnp.float32)
        # C[w, oi*ow + oj] = 1/k^2  iff  oj*k <= w < (oj+1)*k  (no int division)
        C = jnp.zeros((W, LANE), jnp.float32)
        for oj in range(ow):
            m = ((l_iota == oi * ow + oj)
                 & (w_iota >= oj * k) & (w_iota < (oj + 1) * k))
            C = jnp.where(m, inv, C)
        out = out + jnp.dot(rs, C, preferred_element_type=jnp.float32)
    o_ref[...] = out.astype(o_ref.dtype)


def _img_filter_pool4_forward(x, H, W, k, n_out, block_b=1024, trim=True):
    """x: [B, 1, H, W] -> [B, 1, n_out] (or [B, 1, 128] if trim=False)."""
    B = x.shape[0]
    f_in = H * W
    c_pad = _round_up(n_out, LANE)
    x2d = x.reshape(B, f_in)

    tb = _choose_batch_tile(B, block_b)
    grid = (pl.cdiv(B, tb),)

    itemsize = jnp.dtype(x.dtype).itemsize
    cost = pl.CostEstimate(
        flops=2 * B * f_in,                       # ~one MAC per input pixel
        transcendentals=0,
        bytes_accessed=(B * f_in + B * c_pad) * itemsize,
    )

    kernel = functools.partial(_pool4_kernel, H=H, W=W, k=k)
    out = pl.pallas_call(
        kernel,
        out_shape=jax.ShapeDtypeStruct((B, c_pad), x.dtype),
        grid_spec=pltpu.PrefetchScalarGridSpec(
            num_scalar_prefetch=0,
            grid=grid,
            in_specs=[pl.BlockSpec((tb, f_in), lambda i: (i, 0))],
            out_specs=pl.BlockSpec((tb, c_pad), lambda i: (i, 0)),
        ),
        compiler_params=pltpu.CompilerParams(
            dimension_semantics=("parallel",)),
        cost_estimate=cost,
    )(x2d)

    if not trim:
        return out.reshape(B, 1, c_pad)
    return out[:, :n_out].reshape(B, 1, n_out)


# ----------------------------------------------------------------------------
# Factory matching the PyTorch module's forward semantics.
# ----------------------------------------------------------------------------
def make_img_filter(n_wires, H, W, dtype=jnp.float32, block_b=1024, trim=True):
    if n_wires == 4:
        k = 6                                     # F.avg_pool2d(x, 6)
        n_out = (H // k) * (W // k)
        assert n_out == n_wires ** 2, (n_out, n_wires ** 2)
        return functools.partial(_img_filter_pool4_forward, H=H, W=W, k=k,
                                 n_out=n_out, block_b=block_b, trim=trim)
    elif n_wires == 10:
        # F.avg_pool2d(x, 5, stride=3, padding=2)
        pool_mat, n_out = build_avg_pool_matrix(H, W, 5, 3, 2, dtype=dtype)
        assert n_out == n_wires ** 2, (n_out, n_wires ** 2)
        return functools.partial(_img_filter_matmul_forward, pool_mat=pool_mat,
                                 n_out=n_out, block_b=block_b, trim=trim)
    raise ValueError("ImgFilter only supports n_wires in {4, 10}")


def reference_forward(x, n_wires):
    if n_wires == 4:
        k, s, p = 6, 6, 0
    else:
        k, s, p = 5, 3, 2
    summed = jax.lax.reduce_window(
        x, 0.0, jax.lax.add,
        window_dimensions=(1, 1, k, k),
        window_strides=(1, 1, s, s),
        padding=((0, 0), (0, 0), (p, p), (p, p)))
    pooled = summed / float(k * k)                # count_include_pad=True divisor
    return pooled.reshape(x.shape[0], 1, -1)


if __name__ == "__main__":
    key = jax.random.PRNGKey(0)
    k10, k4, kbig = jax.random.split(key, 3)
    B = 8

    # n_wires=10 (module default): MNIST-shaped [B, 1, 28, 28] -> [B, 1, 100].
    x10 = jax.random.normal(k10, (B, 1, 28, 28), dtype=jnp.float32)
    fwd10 = make_img_filter(n_wires=10, H=28, W=28)
    out10 = jax.block_until_ready(fwd10(x10))
    ref10 = reference_forward(x10, 10)
    assert out10.shape == (B, 1, 100)
    assert jnp.allclose(out10, ref10, atol=1e-5, rtol=1e-4), "n_wires=10 mismatch"

    # n_wires=4: [B, 1, 24, 24] -> avg_pool2d(k=6) -> [B, 1, 16] (matrix-free kernel).
    x4 = jax.random.normal(k4, (B, 1, 24, 24), dtype=jnp.float32)
    fwd4 = make_img_filter(n_wires=4, H=24, W=24)
    out4 = jax.block_until_ready(fwd4(x4))
    ref4 = reference_forward(x4, 4)
    assert out4.shape == (B, 1, 16)
    assert jnp.allclose(out4, ref4, atol=1e-5, rtol=1e-4), "n_wires=4 mismatch"

    # Multi-tile path: B=20 -> 2 batch tiles of 16 rows (second is an edge/
    # overhang tile), exercising the >=2-tile split and Pallas edge handling.
    Bb = 20
    xb = jax.random.normal(kbig, (Bb, 1, 28, 28), dtype=jnp.float32)
    outb = jax.block_until_ready(fwd10(xb))
    refb = reference_forward(xb, 10)
    assert outb.shape == (Bb, 1, 100)
    assert jnp.allclose(outb, refb, atol=1e-5, rtol=1e-4), "multi-tile mismatch"

    print("KERNEL_OK")
</pallas_src>

<mosaic_0001>
module attributes {stable_mosaic.version = 11 : i64} {
  func.func @_matmul_pool_kernel(%arg0: i32, %arg1: memref<8x784xf32, #tpu.memory_space<vmem>>, %arg2: memref<784x128xf32, #tpu.memory_space<vmem>>, %arg3: memref<8x128xf32, #tpu.memory_space<vmem>>) attributes {dimension_semantics = [#tpu.dimension_semantics<parallel>], iteration_bounds = array<i64: 1>, scalar_prefetch = 0 : i64, scratch_operands = 0 : i64, tpu.core_type = #tpu.core_type<tc>, window_params = [{transform_indices = @transform_0, window_bounds = array<i64: 8, 784>}, {pipeline_mode = #tpu.pipeline_mode<synchronous>, transform_indices = @transform_1, window_bounds = array<i64: 784, 128>}, {transform_indices = @transform_2, window_bounds = array<i64: 8, 128>}]} {
    %c0 = arith.constant 0 : index
    %c0_0 = arith.constant 0 : index
    %0 = vector.load %arg1[%c0, %c0_0] : memref<8x784xf32, #tpu.memory_space<vmem>>, vector<8x784xf32>
    %c0_1 = arith.constant 0 : index
    %c0_2 = arith.constant 0 : index
    %1 = vector.load %arg2[%c0_1, %c0_2] : memref<784x128xf32, #tpu.memory_space<vmem>>, vector<784x128xf32>
    %cst = arith.constant dense<0.000000e+00> : vector<8x128xf32>
    %2 = tpu.matmul %0, %1, %cst {dimension_numbers = #tpu.dot_dimension_numbers<[1], [0], [0], [1], [0, 0, 1, 1], [], []>} : vector<8x784xf32>, vector<784x128xf32>, vector<8x128xf32> -> vector<8x128xf32>
    %c0_3 = arith.constant 0 : index
    %c0_4 = arith.constant 0 : index
    %3 = vector.load %arg3[%c0_3, %c0_4] : memref<8x128xf32, #tpu.memory_space<vmem>>, vector<8x128xf32>
    tpu.vector_store %arg3[%c0_3, %c0_4], %2 {strides = array<i32>} : memref<8x128xf32, #tpu.memory_space<vmem>>, vector<8x128xf32>,
    return
  }
  func.func @transform_0(%arg0: i32) -> (i32, i32) {
    %c0_i32 = arith.constant 0 : i32
    %c0_i32_0 = arith.constant 0 : i32
    return %arg0, %c0_i32 : i32, i32
  }
  func.func @transform_1(%arg0: i32) -> (i32, i32) {
    %c0_i32 = arith.constant 0 : i32
    %c0_i32_0 = arith.constant 0 : i32
    %c0_i32_1 = arith.constant 0 : i32
    return %c0_i32, %c0_i32_0 : i32, i32
  }
  func.func @transform_2(%arg0: i32) -> (i32, i32) {
    %c0_i32 = arith.constant 0 : i32
    %c0_i32_0 = arith.constant 0 : i32
    return %arg0, %c0_i32 : i32, i32
  }
}

</mosaic_0001>

<llo_original>
// kernel: tpu_custom_call.1
$region0: #{tpu_custom_call.1}
  #allocation0 [shape = 'u32[]', space=smem, size = 0x4, offset = 0x4, fixed_abs, tag = 'smem constant byte address 0x4 - core index']
  #allocation1 [shape = 'u32[144,128]{1,0:T(1,128)}', space=vmem, size = 0x12000, scoped, tag = 'internal scratch']
  %s0 = inlined_call_operand.hbm [shape: f32[8,784], index: 0, kind: input, shape index: {}]
  %s1 = inlined_call_operand.hbm [shape: f32[784,128], index: 1, kind: input, shape index: {}]
  %s2 = inlined_call_operand.hbm [shape: f32[8,128], index: 2, kind: output, shape index: {}]
  %s3 = sld [smem:[#allocation0]]
  $region26: #{tpu_custom_call.1} parent=0
    _
  %s5 = ssub.s32 1, %s3
  %s6 = scalar_select 0, %s5, %s3
  $region1: #{tpu_custom_call.1} parent=0
    #allocation2 [shape = 'u8[28672]{0}', space=vmem, size = 0x7000, scoped, tag = 'input window, operand 0, single buffered']
    #allocation3 [shape = 's32[1]{0}', space=sflag, size = 0x4, scoped, tag = 'scoped memory for tpu_custom_call.1']
    #allocation4 [shape = 's32[1]{0}', space=sflag, size = 0x4, scoped, tag = 'scoped memory for tpu_custom_call.1']
    #allocation5 [shape = 'u8[401408]{0}', space=vmem, size = 0x62000, scoped, tag = 'input window, operand 1, single buffered']
    #allocation6 [shape = 's32[1]{0}', space=sflag, size = 0x4, scoped, tag = 'scoped memory for tpu_custom_call.1']
    #allocation7 [shape = 'u8[4096]{0}', space=vmem, size = 0x1000, scoped, tag = 'output window, operand 0, single buffered']
    %7 = vsyncpa [#allocation3], 0
    %8 = vsyncpa [#allocation6], 0
    %9 = vsyncpa [#allocation4], 0
    // Predicated region
    $region2: #{tpu_custom_call.1} parent=1 // pred_check
      _
    $region3: #{tpu_custom_call.1} parent=1 // pred_check_branch
      %11 = sbr.rel (0) target = $region5
    $region4: #{tpu_custom_call.1} parent=1 // pred_region
      %s13 = ssub.s32 896, 896
      %14 = vsyncadd [#allocation3], %s13
      %s16 = sshll.u32 [#allocation2], 4
      %s17 = int_to_ptr.vmem [resolvable:$true] %s16
      %19 = dma.hbm_to_vmem [thread:$0]  %s0, 896, %s17, [#allocation3]
    $region5: #{tpu_custom_call.1} parent=1 // pred_fallthru
      _
    // Predicated region
    $region6: #{tpu_custom_call.1} parent=1 // pred_check
      _
    $region7: #{tpu_custom_call.1} parent=1 // pred_check_branch
      %21 = sbr.rel (0) target = $region9
    $region8: #{tpu_custom_call.1} parent=1 // pred_region
      %s23 = ssub.s32 12544, 12544
      %24 = vsyncadd [#allocation6], %s23
      %s25 = sshll.u32 [#allocation5], 4
      %s26 = int_to_ptr.vmem [resolvable:$true] %s25
      %31 = dma.hbm_to_vmem [thread:$0]  %s1, 12544, %s26, [#allocation6], 128, 128, 8
    $region9: #{tpu_custom_call.1} parent=1 // pred_fallthru
      _
    // Predicated region
    $region10: #{tpu_custom_call.1} parent=1 // pred_check
      _
    $region11: #{tpu_custom_call.1} parent=1 // pred_check_branch
      %33 = sbr.rel (0) target = $region13
    $region12: #{tpu_custom_call.1} parent=1 // pred_region
      %34 = dma.done [#allocation3], 896
    $region13: #{tpu_custom_call.1} parent=1 // pred_fallthru
      _
    // Predicated region
    $region14: #{tpu_custom_call.1} parent=1 // pred_check
      _
    $region15: #{tpu_custom_call.1} parent=1 // pred_check_branch
      %36 = sbr.rel (0) target = $region17
    $region16: #{tpu_custom_call.1} parent=1 // pred_region
      %37 = dma.done [#allocation6], 12544
    $region17: #{tpu_custom_call.1} parent=1 // pred_fallthru
      _
    %v38 = vld [vmem:[#allocation2] sm:$0xff]
    %v39 = vld [vmem:[#allocation2 + $0x8] sm:$0xff]
    %v40 = vld [vmem:[#allocation2 + $0x10] sm:$0xff]
    %v41 = vld [vmem:[#allocation2 + $0x18] sm:$0xff]
    %v42 = vld [vmem:[#allocation2 + $0x20] sm:$0xff]
    %v43 = vld [vmem:[#allocation2 + $0x28] sm:$0xff]
    %v44 = vld [vmem:[#allocation2 + $0x30] sm:$0xff]
    %v45 = vld [vmem:[#allocation5] sm:$0xff]
    %v46 = vld [vmem:[#allocation5 + $0x8] sm:$0xff]
    %v47 = vld [vmem:[#allocation5 + $0x10] sm:$0xff]
    %v48 = vld [vmem:[#allocation5 + $0x18] sm:$0xff]
    %v49 = vld [vmem:[#allocation5 + $0x20] sm:$0xff]
    %v50 = vld [vmem:[#allocation5 + $0x28] sm:$0xff]
    %v51 = vld [vmem:[#allocation5 + $0x30] sm:$0xff]
    %v52 = vld [vmem:[#allocation5 + $0x38] sm:$0xff]
    %v53 = vld [vmem:[#allocation5 + $0x40] sm:$0xff]
    %v54 = vld [vmem:[#allocation5 + $0x48] sm:$0xff]
    %v55 = vld [vmem:[#allocation5 + $0x50] sm:$0xff]
    %v56 = vld [vmem:[#allocation5 + $0x58] sm:$0xff]
    %v57 = vld [vmem:[#allocation5 + $0x60] sm:$0xff]
    %v58 = vld [vmem:[#allocation5 + $0x68] sm:$0xff]
    %v59 = vld [vmem:[#allocation5 + $0x70] sm:$0xff]
    %v60 = vld [vmem:[#allocation5 + $0x78] sm:$0xff]
    %v61 = vld [vmem:[#allocation5 + $0x80] sm:$0xff]
    %v62 = vld [vmem:[#allocation5 + $0x88] sm:$0xff]
    %v63 = vld [vmem:[#allocation5 + $0x90] sm:$0xff]
    %v64 = vld [vmem:[#allocation5 + $0x98] sm:$0xff]
    %v65 = vld [vmem:[#allocation5 + $0xa0] sm:$0xff]
    %v66 = vld [vmem:[#allocation5 + $0xa8] sm:$0xff]
    %v67 = vld [vmem:[#allocation5 + $0xb0] sm:$0xff]
    %v68 = vld [vmem:[#allocation5 + $0xb8] sm:$0xff]
    %v69 = vld [vmem:[#allocation5 + $0xc0] sm:$0xff]
    %v70 = vld [vmem:[#allocation5 + $0xc8] sm:$0xff]
    %v71 = vld [vmem:[#allocation5 + $0xd0] sm:$0xff]
    %v72 = vld [vmem:[#allocation5 + $0xd8] sm:$0xff]
    %v73 = vld [vmem:[#allocation5 + $0xe0] sm:$0xff]
    %v74 = vld [vmem:[#allocation5 + $0xe8] sm:$0xff]
    %v75 = vld [vmem:[#allocation5 + $0xf0] sm:$0xff]
    %v76 = vld [vmem:[#allocation5 + $0xf8] sm:$0xff]
    %v77 = vld [vmem:[#allocation5 + $0x100] sm:$0xff]
    %v78 = vld [vmem:[#allocation5 + $0x108] sm:$0xff]
    %v79 = vld [vmem:[#allocation5 + $0x110] sm:$0xff]
    %v80 = vld [vmem:[#allocation5 + $0x118] sm:$0xff]
    %v81 = vld [vmem:[#allocation5 + $0x120] sm:$0xff]
    %v82 = vld [vmem:[#allocation5 + $0x128] sm:$0xff]
    %v83 = vld [vmem:[#allocation5 + $0x130] sm:$0xff]
    %v84 = vld [vmem:[#allocation5 + $0x138] sm:$0xff]
    %v85 = vld [vmem:[#allocation5 + $0x140] sm:$0xff]
    %v86 = vld [vmem:[#allocation5 + $0x148] sm:$0xff]
    %v87 = vld [vmem:[#allocation5 + $0x150] sm:$0xff]
    %v88 = vld [vmem:[#allocation5 + $0x158] sm:$0xff]
    %v89 = vld [vmem:[#allocation5 + $0x160] sm:$0xff]
    %v90 = vld [vmem:[#allocation5 + $0x168] sm:$0xff]
    %v91 = vld [vmem:[#allocation5 + $0x170] sm:$0xff]
    %v92 = vld [vmem:[#allocation5 + $0x178] sm:$0xff]
    %v93 = vld [vmem:[#allocation5 + $0x180] sm:$0xff]
    %v94 = vld [vmem:[#allocation5 + $0x188] sm:$0xff]
    %v95 = vld [vmem:[#allocation5 + $0x190] sm:$0xff]
    %v96 = vld [vmem:[#allocation5 + $0x198] sm:$0xff]
    %v97 = vld [vmem:[#allocation5 + $0x1a0] sm:$0xff]
    %v98 = vld [vmem:[#allocation5 + $0x1a8] sm:$0xff]
    %v99 = vld [vmem:[#allocation5 + $0x1b0] sm:$0xff]
    %v100 = vld [vmem:[#allocation5 + $0x1b8] sm:$0xff]
    %v101 = vld [vmem:[#allocation5 + $0x1c0] sm:$0xff]
    %v102 = vld [vmem:[#allocation5 + $0x1c8] sm:$0xff]
    %v103 = vld [vmem:[#allocation5 + $0x1d0] sm:$0xff]
    %v104 = vld [vmem:[#allocation5 + $0x1d8] sm:$0xff]
    %v105 = vld [vmem:[#allocation5 + $0x1e0] sm:$0xff]
    %v106 = vld [vmem:[#allocation5 + $0x1e8] sm:$0xff]
    %v107 = vld [vmem:[#allocation5 + $0x1f0] sm:$0xff]
    %v108 = vld [vmem:[#allocation5 + $0x1f8] sm:$0xff]
    %v109 = vld [vmem:[#allocation5 + $0x200] sm:$0xff]
    %v110 = vld [vmem:[#allocation5 + $0x208] sm:$0xff]
    %v111 = vld [vmem:[#allocation5 + $0x210] sm:$0xff]
    %v112 = vld [vmem:[#allocation5 + $0x218] sm:$0xff]
    %v113 = vld [vmem:[#allocation5 + $0x220] sm:$0xff]
    %v114 = vld [vmem:[#allocation5 + $0x228] sm:$0xff]
    %v115 = vld [vmem:[#allocation5 + $0x230] sm:$0xff]
    %v116 = vld [vmem:[#allocation5 + $0x238] sm:$0xff]
    %v117 = vld [vmem:[#allocation5 + $0x240] sm:$0xff]
    %v118 = vld [vmem:[#allocation5 + $0x248] sm:$0xff]
    %v119 = vld [vmem:[#allocation5 + $0x250] sm:$0xff]
    %v120 = vld [vmem:[#allocation5 + $0x258] sm:$0xff]
    %v121 = vld [vmem:[#allocation5 + $0x260] sm:$0xff]
    %v122 = vld [vmem:[#allocation5 + $0x268] sm:$0xff]
    %v123 = vld [vmem:[#allocation5 + $0x270] sm:$0xff]
    %v124 = vld [vmem:[#allocation5 + $0x278] sm:$0xff]
    %v125 = vld [vmem:[#allocation5 + $0x280] sm:$0xff]
    %v126 = vld [vmem:[#allocation5 + $0x288] sm:$0xff]
    %v127 = vld [vmem:[#allocation5 + $0x290] sm:$0xff]
    %v128 = vld [vmem:[#allocation5 + $0x298] sm:$0xff]
    %v129 = vld [vmem:[#allocation5 + $0x2a0] sm:$0xff]
    %v130 = vld [vmem:[#allocation5 + $0x2a8] sm:$0xff]
    %v131 = vld [vmem:[#allocation5 + $0x2b0] sm:$0xff]
    %v132 = vld [vmem:[#allocation5 + $0x2b8] sm:$0xff]
    %v133 = vld [vmem:[#allocation5 + $0x2c0] sm:$0xff]
    %v134 = vld [vmem:[#allocation5 + $0x2c8] sm:$0xff]
    %v135 = vld [vmem:[#allocation5 + $0x2d0] sm:$0xff]
    %v136 = vld [vmem:[#allocation5 + $0x2d8] sm:$0xff]
    %v137 = vld [vmem:[#allocation5 + $0x2e0] sm:$0xff]
    %v138 = vld [vmem:[#allocation5 + $0x2e8] sm:$0xff]
    %v139 = vld [vmem:[#allocation5 + $0x2f0] sm:$0xff]
    %v140 = vld [vmem:[#allocation5 + $0x2f8] sm:$0xff]
    %v141 = vld [vmem:[#allocation5 + $0x300] sm:$0xff]
    %v142 = vld [vmem:[#allocation5 + $0x308] sm:$0xff]
    %vm143 = vcmask 130048
    %v145 = vsel %vm143, %v44, 0
    %147 = vmatprep.subr.mxu0 0.0
    %148 = vmatpush1.msra.mxu0 %v60
    %149 = vmatprep.subr.mxu0 0.0
    %150 = vmatpush1.msra.mxu0 %v59
    %151 = vmatprep.subr.mxu0 0.0
    %152 = vmatpush1.msra.mxu0 %v58
    %153 = vmatprep.subr.mxu0 0.0
    %154 = vmatpush1.msra.mxu0 %v57
    %155 = vmatprep.subr.mxu0 0.0
    %156 = vmatpush1.msra.mxu0 %v56
    %157 = vmatprep.subr.mxu0 0.0
    %158 = vmatpush1.msra.mxu0 %v55
    %159 = vmatprep.subr.mxu0 0.0
    %160 = vmatpush1.msra.mxu0 %v54
    %161 = vmatprep.subr.mxu0 0.0
    %162 = vmatpush1.msra.mxu0 %v53
    %163 = vmatprep.subr.mxu0 0.0
    %164 = vmatpush1.msra.mxu0 %v52
    %165 = vmatprep.subr.mxu0 0.0
    %166 = vmatpush1.msra.mxu0 %v51
    %167 = vmatprep.subr.mxu0 0.0
    %168 = vmatpush1.msra.mxu0 %v50
    %169 = vmatprep.subr.mxu0 0.0
    %170 = vmatpush1.msra.mxu0 %v49
    %171 = vmatprep.subr.mxu0 0.0
    %172 = vmatpush1.msra.mxu0 %v48
    %173 = vmatprep.subr.mxu0 0.0
    %174 = vmatpush1.msra.mxu0 %v47
    %175 = vmatprep.subr.mxu0 0.0
    %176 = vmatpush1.msra.mxu0 %v46
    %177 = vmatprep.subr.mxu0 0.0
    %178 = vmatpush1.msra.mxu0 %v45
    %179 = vmatprep.subr.mxu0 0.0
    %180 = vmatpush2.msra.mxu0 %v76
    %181 = vmatprep.subr.mxu0 0.0
    %182 = vmatpush2.msra.mxu0 %v75
    %183 = vmatprep.subr.mxu0 0.0
    %184 = vmatpush2.msra.mxu0 %v74
    %185 = vmatprep.subr.mxu0 0.0
    %186 = vmatpush2.msra.mxu0 %v73
    %187 = vmatprep.subr.mxu0 0.0
    %188 = vmatpush2.msra.mxu0 %v72
    %189 = vmatprep.subr.mxu0 0.0
    %190 = vmatpush2.msra.mxu0 %v71
    %191 = vmatprep.subr.mxu0 0.0
    %192 = vmatpush2.msra.mxu0 %v70
    %193 = vmatprep.subr.mxu0 0.0
    %194 = vmatpush2.msra.mxu0 %v69
    %195 = vmatprep.subr.mxu0 0.0
    %196 = vmatpush2.msra.mxu0 %v68
    %197 = vmatprep.subr.mxu0 0.0
    %198 = vmatpush2.msra.mxu0 %v67
    %199 = vmatprep.subr.mxu0 0.0
    %200 = vmatpush2.msra.mxu0 %v66
    %201 = vmatprep.subr.mxu0 0.0
    %202 = vmatpush2.msra.mxu0 %v65
    %203 = vmatprep.subr.mxu0 0.0
    %204 = vmatpush2.msra.mxu0 %v64
    %205 = vmatprep.subr.mxu0 0.0
    %206 = vmatpush2.msra.mxu0 %v63
    %207 = vmatprep.subr.mxu0 0.0
    %208 = vmatpush2.msra.mxu0 %v62
    %209 = vmatprep.subr.mxu0 0.0
    %210 = vmatpush2.msra.mxu0 %v61
    %211 = vmatprep.mubr.f32.mxu0 %v39
    %212 = vmatmul.mubr.f32.gmra.mxu0 %v38
    %v213 = vpop.f32.mrf.mxu0
    %v214 = vadd.f32 0.0, %v213
    %v215 = vpop.f32.mrf.mxu0
    %216 = vdwg.mxu0
    %217 = vmatprep.subr.mxu0 0.0
    %218 = vmatpush1.msra.mxu0 %v92
    %219 = vmatprep.subr.mxu0 0.0
    %220 = vmatpush1.msra.mxu0 %v91
    %221 = vmatprep.subr.mxu0 0.0
    %222 = vmatpush1.msra.mxu0 %v90
    %223 = vmatprep.subr.mxu0 0.0
    %224 = vmatpush1.msra.mxu0 %v89
    %225 = vmatprep.subr.mxu0 0.0
    %226 = vmatpush1.msra.mxu0 %v88
    %227 = vmatprep.subr.mxu0 0.0
    %228 = vmatpush1.msra.mxu0 %v87
    %229 = vmatprep.subr.mxu0 0.0
    %230 = vmatpush1.msra.mxu0 %v86
    %231 = vmatprep.subr.mxu0 0.0
    %232 = vmatpush1.msra.mxu0 %v85
    %233 = vmatprep.subr.mxu0 0.0
    %234 = vmatpush1.msra.mxu0 %v84
    %235 = vmatprep.subr.mxu0 0.0
    %236 = vmatpush1.msra.mxu0 %v83
    %237 = vmatprep.subr.mxu0 0.0
    %238 = vmatpush1.msra.mxu0 %v82
    %239 = vmatprep.subr.mxu0 0.0
    %240 = vmatpush1.msra.mxu0 %v81
    %241 = vmatprep.subr.mxu0 0.0
    %242 = vmatpush1.msra.mxu0 %v80
    %243 = vmatprep.subr.mxu0 0.0
    %244 = vmatpush1.msra.mxu0 %v79
    %245 = vmatprep.subr.mxu0 0.0
    %246 = vmatpush1.msra.mxu0 %v78
    %247 = vmatprep.subr.mxu0 0.0
    %248 = vmatpush1.msra.mxu0 %v77
    %249 = vmatprep.subr.mxu0 0.0
    %250 = vmatpush2.msra.mxu0 %v108
    %251 = vmatprep.subr.mxu0 0.0
    %252 = vmatpush2.msra.mxu0 %v107
    %253 = vmatprep.subr.mxu0 0.0
    %254 = vmatpush2.msra.mxu0 %v106
    %255 = vmatprep.subr.mxu0 0.0
    %256 = vmatpush2.msra.mxu0 %v105
    %257 = vmatprep.subr.mxu0 0.0
    %258 = vmatpush2.msra.mxu0 %v104
    %259 = vmatprep.subr.mxu0 0.0
    %260 = vmatpush2.msra.mxu0 %v103
    %261 = vmatprep.subr.mxu0 0.0
    %262 = vmatpush2.msra.mxu0 %v102
    %263 = vmatprep.subr.mxu0 0.0
    %264 = vmatpush2.msra.mxu0 %v101
    %265 = vmatprep.subr.mxu0 0.0
    %266 = vmatpush2.msra.mxu0 %v100
    %267 = vmatprep.subr.mxu0 0.0
    %268 = vmatpush2.msra.mxu0 %v99
    %269 = vmatprep.subr.mxu0 0.0
    %270 = vmatpush2.msra.mxu0 %v98
    %271 = vmatprep.subr.mxu0 0.0
    %272 = vmatpush2.msra.mxu0 %v97
    %273 = vmatprep.subr.mxu0 0.0
    %274 = vmatpush2.msra.mxu0 %v96
    %275 = vmatprep.subr.mxu0 0.0
    %276 = vmatpush2.msra.mxu0 %v95
    %277 = vmatprep.subr.mxu0 0.0
    %278 = vmatpush2.msra.mxu0 %v94
    %279 = vmatprep.subr.mxu0 0.0
    %280 = vmatpush2.msra.mxu0 %v93
    %281 = vmatprep.mubr.f32.mxu0 %v41
    %282 = vmatmul.mubr.f32.gmra.mxu0 %v40
    %v283 = vpop.f32.mrf.mxu0
    %v284 = vadd.f32 %v214, %v283
    %v285 = vpop.f32.mrf.mxu0
    %286 = vdwg.mxu0
    %287 = vmatprep.subr.mxu0 0.0
    %288 = vmatpush1.msra.mxu0 %v124
    %289 = vmatprep.subr.mxu0 0.0
    %290 = vmatpush1.msra.mxu0 %v123
    %291 = vmatprep.subr.mxu0 0.0
    %292 = vmatpush1.msra.mxu0 %v122
    %293 = vmatprep.subr.mxu0 0.0
    %294 = vmatpush1.msra.mxu0 %v121
    %295 = vmatprep.subr.mxu0 0.0
    %296 = vmatpush1.msra.mxu0 %v120
    %297 = vmatprep.subr.mxu0 0.0
    %298 = vmatpush1.msra.mxu0 %v119
    %299 = vmatprep.subr.mxu0 0.0
    %300 = vmatpush1.msra.mxu0 %v118
    %301 = vmatprep.subr.mxu0 0.0
    %302 = vmatpush1.msra.mxu0 %v117
    %303 = vmatprep.subr.mxu0 0.0
    %304 = vmatpush1.msra.mxu0 %v116
    %305 = vmatprep.subr.mxu0 0.0
    %306 = vmatpush1.msra.mxu0 %v115
    %307 = vmatprep.subr.mxu0 0.0
    %308 = vmatpush1.msra.mxu0 %v114
    %309 = vmatprep.subr.mxu0 0.0
    %310 = vmatpush1.msra.mxu0 %v113
    %311 = vmatprep.subr.mxu0 0.0
    %312 = vmatpush1.msra.mxu0 %v112
    %313 = vmatprep.subr.mxu0 0.0
    %314 = vmatpush1.msra.mxu0 %v111
    %315 = vmatprep.subr.mxu0 0.0
    %316 = vmatpush1.msra.mxu0 %v110
    %317 = vmatprep.subr.mxu0 0.0
    %318 = vmatpush1.msra.mxu0 %v109
    %319 = vmatprep.subr.mxu0 0.0
    %320 = vmatpush2.msra.mxu0 %v140
    %321 = vmatprep.subr.mxu0 0.0
    %322 = vmatpush2.msra.mxu0 %v139
    %323 = vmatprep.subr.mxu0 0.0
    %324 = vmatpush2.msra.mxu0 %v138
    %325 = vmatprep.subr.mxu0 0.0
    %326 = vmatpush2.msra.mxu0 %v137
    %327 = vmatprep.subr.mxu0 0.0
    %328 = vmatpush2.msra.mxu0 %v136
    %329 = vmatprep.subr.mxu0 0.0
    %330 = vmatpush2.msra.mxu0 %v135
    %331 = vmatprep.subr.mxu0 0.0
    %332 = vmatpush2.msra.mxu0 %v134
    %333 = vmatprep.subr.mxu0 0.0
    %334 = vmatpush2.msra.mxu0 %v133
    %335 = vmatprep.subr.mxu0 0.0
    %336 = vmatpush2.msra.mxu0 %v132
    %337 = vmatprep.subr.mxu0 0.0
    %338 = vmatpush2.msra.mxu0 %v131
    %339 = vmatprep.subr.mxu0 0.0
    %340 = vmatpush2.msra.mxu0 %v130
    %341 = vmatprep.subr.mxu0 0.0
    %342 = vmatpush2.msra.mxu0 %v129
    %343 = vmatprep.subr.mxu0 0.0
    %344 = vmatpush2.msra.mxu0 %v128
    %345 = vmatprep.subr.mxu0 0.0
    %346 = vmatpush2.msra.mxu0 %v127
    %347 = vmatprep.subr.mxu0 0.0
    %348 = vmatpush2.msra.mxu0 %v126
    %349 = vmatprep.subr.mxu0 0.0
    %350 = vmatpush2.msra.mxu0 %v125
    %351 = vmatprep.mubr.f32.mxu0 %v43
    %352 = vmatmul.mubr.f32.gmra.mxu0 %v42
    %v353 = vpop.f32.mrf.mxu0
    %v354 = vadd.f32 %v284, %v353
    %v355 = vpop.f32.mrf.mxu0
    %356 = vdwg.mxu0
    %357 = vmatprep.subr.mxu0 0.0
    %358 = vmatpush1.msra.mxu0 0.0
    %359 = vmatprep.subr.mxu0 0.0
    %360 = vmatpush1.msra.mxu0 0.0
    %361 = vmatprep.subr.mxu0 0.0
    %362 = vmatpush1.msra.mxu0 0.0
    %363 = vmatprep.subr.mxu0 0.0
    %364 = vmatpush1.msra.mxu0 0.0
    %365 = vmatprep.subr.mxu0 0.0
    %366 = vmatpush1.msra.mxu0 0.0
    %367 = vmatprep.subr.mxu0 0.0
    %368 = vmatpush1.msra.mxu0 0.0
    %369 = vmatprep.subr.mxu0 0.0
    %370 = vmatpush1.msra.mxu0 0.0
    %371 = vmatprep.subr.mxu0 0.0
    %372 = vmatpush1.msra.mxu0 0.0
    %373 = vmatprep.subr.mxu0 0.0
    %374 = vmatpush1.msra.mxu0 0.0
    %375 = vmatprep.subr.mxu0 0.0
    %376 = vmatpush1.msra.mxu0 0.0
    %377 = vmatprep.subr.mxu0 0.0
    %378 = vmatpush1.msra.mxu0 0.0
    %379 = vmatprep.subr.mxu0 0.0
    %380 = vmatpush1.msra.mxu0 0.0
    %381 = vmatprep.subr.mxu0 0.0
    %382 = vmatpush1.msra.mxu0 0.0
    %383 = vmatprep.subr.mxu0 0.0
    %384 = vmatpush1.msra.mxu0 0.0
    %385 = vmatprep.subr.mxu0 0.0
    %386 = vmatpush1.msra.mxu0 %v142
    %387 = vmatprep.subr.mxu0 0.0
    %388 = vmatpush1.msra.mxu0 %v141
    %389 = vmatprep.subr.mxu0 0.0
    %390 = vmatpush2.msra.mxu0 0.0
    %391 = vmatprep.subr.mxu0 0.0
    %392 = vmatpush2.msra.mxu0 0.0
    %393 = vmatprep.subr.mxu0 0.0
    %394 = vmatpush2.msra.mxu0 0.0
    %395 = vmatprep.subr.mxu0 0.0
    %396 = vmatpush2.msra.mxu0 0.0
    %397 = vmatprep.subr.mxu0 0.0
    %398 = vmatpush2.msra.mxu0 0.0
    %399 = vmatprep.subr.mxu0 0.0
    %400 = vmatpush2.msra.mxu0 0.0
    %401 = vmatprep.subr.mxu0 0.0
    %402 = vmatpush2.msra.mxu0 0.0
    %403 = vmatprep.subr.mxu0 0.0
    %404 = vmatpush2.msra.mxu0 0.0
    %405 = vmatprep.subr.mxu0 0.0
    %406 = vmatpush2.msra.mxu0 0.0
    %407 = vmatprep.subr.mxu0 0.0
    %408 = vmatpush2.msra.mxu0 0.0
    %409 = vmatprep.subr.mxu0 0.0
    %410 = vmatpush2.msra.mxu0 0.0
    %411 = vmatprep.subr.mxu0 0.0
    %412 = vmatpush2.msra.mxu0 0.0
    %413 = vmatprep.subr.mxu0 0.0
    %414 = vmatpush2.msra.mxu0 0.0
    %415 = vmatprep.subr.mxu0 0.0
    %416 = vmatpush2.msra.mxu0 0.0
    %417 = vmatprep.subr.mxu0 0.0
    %418 = vmatpush2.msra.mxu0 0.0
    %419 = vmatprep.subr.mxu0 0.0
    %420 = vmatpush2.msra.mxu0 0.0
    %421 = vmatprep.mubr.f32.mxu0 0.0
    %422 = vmatmul.mubr.f32.gmra.mxu0 %v145
    %v423 = vpop.f32.mrf.mxu0
    %v424 = vadd.f32 %v354, %v423
    %v425 = vpop.f32.mrf.mxu0
    %426 = vdwg.mxu0
    %427 = vst [vmem:[#allocation7] sm:$0xff] %v424
    // Predicated region
    $region18: #{tpu_custom_call.1} parent=1 // pred_check
      _
    $region19: #{tpu_custom_call.1} parent=1 // pred_check_branch
      %429 = sbr.rel (0) target = $region21
    $region20: #{tpu_custom_call.1} parent=1 // pred_region
      %s431 = ssub.s32 128, 128
      %432 = vsyncadd [#allocation4], %s431
      %s434 = sshll.u32 [#allocation7], 4
      %s435 = int_to_ptr.vmem [resolvable:$true] %s434
      %437 = dma.vmem_to_hbm [thread:$0]  %s435, 128, %s2, [#allocation4]
    $region21: #{tpu_custom_call.1} parent=1 // pred_fallthru
      _
    // Predicated region
    $region22: #{tpu_custom_call.1} parent=1 // pred_check
      _
    $region23: #{tpu_custom_call.1} parent=1 // pred_check_branch
      %439 = sbr.rel (0) target = $region25
    $region24: #{tpu_custom_call.1} parent=1 // pred_region
      %440 = dma.done [#allocation4], 128
    $region25: #{tpu_custom_call.1} parent=1 // pred_fallthru
      _
    %441 = vsyncpa [#allocation3], 1
    %442 = vsyncpa [#allocation6], 1
    %443 = vsyncpa [#allocation4], 1

</llo_original>
